<compile_context>
chip_gen: v7x
topology: tpu7x:2x2x1
jax: 0.10.0
libtpu: 0.0.40
codegen_flags: <defaults>
</compile_context>

<pallas_src>
import functools
import math

import jax
import jax.numpy as jnp
from jax.experimental import pallas as pl
from jax.experimental.pallas import tpu as pltpu

DEFAULT_LOG_STD_MIN = -20.0
DEFAULT_LOG_STD_MAX = 2.0

_LANE = 128
_SUBLANE = 8
_FLT_MAX = float(jnp.finfo(jnp.float32).max)


def _round_up(x, m):
    return (x + m - 1) // m * m


def _cdiv(a, b):
    return -(-a // b)


def _actor_kernel(state_ref, w1_ref, w2_ref, wh_ref, bias_ref, out_ref,
                  *, h_pad, out_pad):
    """One batch tile of the fused Actor MLP.

    bias_ref rows: 0 = fa1 bias, 1 = fa2 bias, 2 = fused-head bias,
                   3 = per-column clamp lower bound, 4 = clamp upper bound.
    Head columns: [0:A) = mean, [A:2A) = log_std, rest zero padding.
    """
    x = state_ref[...]                                   # already bf16

    b1 = bias_ref[0:1, :h_pad]
    b2 = bias_ref[1:2, :h_pad]
    bh = bias_ref[2:3, :out_pad]
    lo = bias_ref[3:4, :out_pad]
    hi = bias_ref[4:5, :out_pad]

    # fa1 + ReLU (f32 epilogue on the VPU)
    h1 = jnp.dot(x, w1_ref[...], preferred_element_type=jnp.float32) + b1
    h1 = jnp.maximum(h1, 0.0)

    # fa2 + ReLU
    h2 = jnp.dot(h1.astype(jnp.bfloat16), w2_ref[...],
                 preferred_element_type=jnp.float32) + b2
    h2 = jnp.maximum(h2, 0.0)

    # Fused mean/log_std heads in one MXU pass.
    head = jnp.dot(h2.astype(jnp.bfloat16), wh_ref[...],
                   preferred_element_type=jnp.float32) + bh

    # Clamp via precomputed per-column bounds: log_std columns get
    # [log_std_min, log_std_max]; mean / padding columns get +-FLT_MAX
    # (pass-through).  Just 2 VPU min/max ops.
    head = jnp.minimum(jnp.maximum(head, lo), hi)

    out_ref[...] = head.astype(out_ref.dtype)            # single lane-dense store


def xavier_uniform(key, fan_out, fan_in, dtype=jnp.float32):
    """Matches torch.nn.init.xavier_uniform_ on a [fan_out, fan_in] weight."""
    bound = math.sqrt(6.0 / (fan_in + fan_out))
    return jax.random.uniform(key, (fan_out, fan_in), dtype=dtype,
                              minval=-bound, maxval=bound)


def init_actor_params(key, state_size, hidden_layer, action_size,
                      log_std_min=DEFAULT_LOG_STD_MIN,
                      log_std_max=DEFAULT_LOG_STD_MAX):
    """Torch-equivalent init, repacked into a TPU-friendly layout.

    Returns dict with:
      w1   [state_size, H_pad]        bf16   (fa1, transposed, lane-padded)
      w2   [H_pad, H_pad]             bf16   (fa2)
      wh   [H_pad, OUT_PAD]           bf16   (mean_linear || log_std_linear)
      bias [5, max(H_pad, OUT_PAD)]   f32    (b1, b2, head bias, clamp lo, hi)
    plus static metadata.
    """
    k1, k2, k3, k4 = jax.random.split(key, 4)
    h_pad = _round_up(hidden_layer, _LANE)
    out_pad = _round_up(2 * action_size, _LANE)
    bmax = max(h_pad, out_pad)

    # torch layout is [out, in]; transpose to kernel layout [in, out].
    w1 = xavier_uniform(k1, hidden_layer, state_size).T       # [S, H]
    w2 = xavier_uniform(k2, hidden_layer, hidden_layer).T     # [H, H]
    wm = xavier_uniform(k3, action_size, hidden_layer).T      # [H, A]
    ws = xavier_uniform(k4, action_size, hidden_layer).T      # [H, A]
    wh = jnp.concatenate([wm, ws], axis=1)                    # [H, 2A] fused heads

    w1 = jnp.pad(w1, ((0, 0), (0, h_pad - hidden_layer))).astype(jnp.bfloat16)
    w2 = jnp.pad(w2, ((0, h_pad - hidden_layer),
                      (0, h_pad - hidden_layer))).astype(jnp.bfloat16)
    wh = jnp.pad(wh, ((0, h_pad - hidden_layer),
                      (0, out_pad - 2 * action_size))).astype(jnp.bfloat16)

    bias = jnp.zeros((5, bmax), jnp.float32)
    bias = bias.at[0, :hidden_layer].set(0.01)                 # fa1.bias.fill_(0.01)
    bias = bias.at[1, :hidden_layer].set(0.01)                 # fa2.bias
    bias = bias.at[2, :2 * action_size].set(0.01)              # mean + log_std biases
    bias = bias.at[3, :].set(-_FLT_MAX)                        # clamp lower bounds
    bias = bias.at[3, action_size:2 * action_size].set(log_std_min)
    bias = bias.at[4, :].set(_FLT_MAX)                         # clamp upper bounds
    bias = bias.at[4, action_size:2 * action_size].set(log_std_max)

    return {
        "w1": w1, "w2": w2, "wh": wh, "bias": bias,
        "state_size": state_size, "hidden_layer": hidden_layer,
        "action_size": action_size, "h_pad": h_pad, "out_pad": out_pad,
        "log_std_min": log_std_min, "log_std_max": log_std_max,
    }


def _choose_batch_tile(B, tb_max):
    """Balanced batch tile.

    For B > 128, pick a multiple-of-128 tile that balances grid steps (so a
    batch like 520 becomes one 640-row tile instead of rounding up to 1024).
    For tiny B, a single 8-row-aligned tile avoids pointless padding.
    """
    if B <= _LANE:
        return _round_up(B, _SUBLANE)
    tb_max = max(_LANE, _round_up(tb_max, _LANE))
    n_tiles = max(1, _cdiv(B, tb_max))
    tb = _round_up(_cdiv(B, n_tiles), _LANE)
    return min(tb, tb_max)


def actor_forward(state, params, *, tb_max=2048, out_dtype=jnp.float32,
                  single_buffer_weights=True):
    """Actor forward as a single Pallas TPU kernel.

    state: [B, state_size] f32.  Returns (mean [B, A], log_std [B, A]) in
    `out_dtype` (f32 default; bf16 halves the HBM writeback).
    """
    B, S = state.shape
    assert S == params["state_size"]
    A = params["action_size"]
    h_pad, out_pad = params["h_pad"], params["out_pad"]

    tb = _choose_batch_tile(B, tb_max)
    b_pad = _round_up(B, tb)

    # Pre-cast the streamed input to bf16: halves the state DMA, and the MXU
    # consumed bf16 anyway so results are unchanged.
    x = state.astype(jnp.bfloat16)
    if b_pad != B:
        x = jnp.pad(x, ((0, b_pad - B), (0, 0)))

    kernel = functools.partial(_actor_kernel, h_pad=h_pad, out_pad=out_pad)

    out_bytes = jnp.dtype(out_dtype).itemsize
    weight_bytes = (params["w1"].size + params["w2"].size
                    + params["wh"].size) * 2 + params["bias"].size * 4
    flops = 2 * b_pad * (S * h_pad + h_pad * h_pad + h_pad * out_pad)
    cost = pl.CostEstimate(
        flops=flops,
        transcendentals=0,
        bytes_accessed=b_pad * S * 2 + b_pad * out_pad * out_bytes + weight_bytes,
    )

    # Rough per-core VMEM need (double-buffered I/O tiles + weights + f32/bf16
    # intermediates) with 2x headroom, clamped to stay inside every
    # generation's physical budget (v7x: 64 MiB / TC; v5e default scoped 16 MiB
    # would otherwise reject large tiles).
    vmem_est = (2 * weight_bytes
                + 2 * tb * S * 2
                + 2 * tb * out_pad * out_bytes
                + tb * (2 * h_pad + out_pad) * 6)
    vmem_limit = int(min(64 * 2**20, max(32 * 2**20, 2 * vmem_est)))

    def build(single_buffer):
        const_kw = {}
        if single_buffer:
            # Grid-invariant operands: no point double-buffering them
            # (frees VMEM headroom for bigger batch tiles / wider hidden).
            const_kw = dict(pipeline_mode=pl.Buffered(1))
        in_specs = [
            pl.BlockSpec((tb, S), lambda i: (i, 0)),               # state streams
            pl.BlockSpec(params["w1"].shape, lambda i: (0, 0), **const_kw),
            pl.BlockSpec(params["w2"].shape, lambda i: (0, 0), **const_kw),
            pl.BlockSpec(params["wh"].shape, lambda i: (0, 0), **const_kw),
            pl.BlockSpec(params["bias"].shape, lambda i: (0, 0), **const_kw),
        ]
        return pl.pallas_call(
            kernel,
            out_shape=jax.ShapeDtypeStruct((b_pad, out_pad), out_dtype),
            grid=(b_pad // tb,),
            in_specs=in_specs,
            out_specs=pl.BlockSpec((tb, out_pad), lambda i: (i, 0)),
            compiler_params=pltpu.CompilerParams(
                dimension_semantics=("parallel",),   # v7x: shard batch tiles over 2 TCs
                vmem_limit_bytes=vmem_limit,
            ),
            cost_estimate=cost,
        )

    args = (x, params["w1"], params["w2"], params["wh"], params["bias"])
    if single_buffer_weights:
        try:
            out = build(True)(*args)
        except Exception:
            # pipeline_mode / Buffered(1) support varies across JAX versions;
            # fall back to default double-buffered invariant operands.
            out = build(False)(*args)
    else:
        out = build(False)(*args)

    mean = out[:B, :A]
    log_std = out[:B, A:2 * A]
    return mean, log_std


def actor_forward_ref(state, params):
    """Pure-JAX reference mirroring the kernel math (bf16 MXU, f32 epilogue)."""
    A = params["action_size"]
    h_pad, out_pad = params["h_pad"], params["out_pad"]
    b1 = params["bias"][0:1, :h_pad]
    b2 = params["bias"][1:2, :h_pad]
    bh = params["bias"][2:3, :out_pad]
    x = state.astype(jnp.bfloat16)
    h1 = jnp.maximum(
        jnp.dot(x, params["w1"], preferred_element_type=jnp.float32) + b1, 0.0)
    h2 = jnp.maximum(
        jnp.dot(h1.astype(jnp.bfloat16), params["w2"],
                preferred_element_type=jnp.float32) + b2, 0.0)
    head = jnp.dot(h2.astype(jnp.bfloat16), params["wh"],
                   preferred_element_type=jnp.float32) + bh
    mean = head[:, :A]
    log_std = jnp.clip(head[:, A:2 * A],
                       params["log_std_min"], params["log_std_max"])
    return mean, log_std


if __name__ == "__main__":
    # Small SAC-Actor-like shapes; hidden is lane-aligned (multiple of 128).
    # (On v6e/v7x, hidden=256 would fill the 256^2 MXU better if the model
    # config allows it; 128 is kept here to match the turtlebot3 config.)
    batch = 16
    state_size = 16       # e.g. lidar + goal features
    hidden_layer = 128
    action_size = 2       # (linear vel, angular vel)

    key = jax.random.PRNGKey(0)
    k_params, k_state, k_big = jax.random.split(key, 3)

    params = init_actor_params(k_params, state_size, hidden_layer, action_size)
    state = jax.random.normal(k_state, (batch, state_size), dtype=jnp.float32)

    # Single-tile path (default f32 output).
    mean, log_std = actor_forward(state, params)
    mean = jax.block_until_ready(mean)
    log_std = jax.block_until_ready(log_std)

    mean_ref, log_std_ref = actor_forward_ref(state, params)
    assert mean.shape == (batch, action_size)
    assert log_std.shape == (batch, action_size)
    assert jnp.allclose(mean, mean_ref, atol=1e-3, rtol=1e-3)
    assert jnp.allclose(log_std, log_std_ref, atol=1e-3, rtol=1e-3)
    assert bool(jnp.all(log_std <= params["log_std_max"]))
    assert bool(jnp.all(log_std >= params["log_std_min"]))

    # Multi-tile grid path: balanced 128-row tiles, padded tail rows sliced off.
    big_b = 260
    state_big = jax.random.normal(k_big, (big_b, state_size), dtype=jnp.float32)
    mean_b, log_std_b = actor_forward(state_big, params, tb_max=128)
    mean_b = jax.block_until_ready(mean_b)
    log_std_b = jax.block_until_ready(log_std_b)
    mean_b_ref, log_std_b_ref = actor_forward_ref(state_big, params)
    assert mean_b.shape == (big_b, action_size)
    assert jnp.allclose(mean_b, mean_b_ref, atol=1e-3, rtol=1e-3)
    assert jnp.allclose(log_std_b, log_std_b_ref, atol=1e-3, rtol=1e-3)

    # Optional low-bandwidth bf16 writeback path.
    mean_h, log_std_h = actor_forward(state, params, out_dtype=jnp.bfloat16)
    mean_h = jax.block_until_ready(mean_h)
    log_std_h = jax.block_until_ready(log_std_h)
    assert jnp.allclose(mean_h.astype(jnp.float32), mean_ref, atol=5e-2, rtol=5e-2)
    assert jnp.allclose(log_std_h.astype(jnp.float32), log_std_ref, atol=5e-2, rtol=5e-2)

    # TODO(synk): Actor.sample() (Normal.rsample, tanh squash, log_prob) is
    # stochastic host-side sampling and is kept outside the kernel.
    print("KERNEL_OK")
</pallas_src>

<mosaic_0001>
module attributes {stable_mosaic.version = 11 : i64} {
  func.func @_actor_kernel(%arg0: i32, %arg1: memref<16x16xbf16, #tpu.memory_space<vmem>>, %arg2: memref<16x128xbf16, #tpu.memory_space<vmem>>, %arg3: memref<128x128xbf16, #tpu.memory_space<vmem>>, %arg4: memref<128x128xbf16, #tpu.memory_space<vmem>>, %arg5: memref<5x128xf32, #tpu.memory_space<vmem>>, %arg6: memref<16x128xf32, #tpu.memory_space<vmem>>) attributes {dimension_semantics = [#tpu.dimension_semantics<parallel>], iteration_bounds = array<i64: 1>, scalar_prefetch = 0 : i64, scratch_operands = 0 : i64, tpu.core_type = #tpu.core_type<tc>, window_params = [{transform_indices = @transform_0, window_bounds = array<i64: 16, 16>}, {pipeline_mode = #tpu.pipeline_mode<synchronous>, transform_indices = @transform_1, window_bounds = array<i64: 16, 128>}, {pipeline_mode = #tpu.pipeline_mode<synchronous>, transform_indices = @transform_2, window_bounds = array<i64: 128, 128>}, {pipeline_mode = #tpu.pipeline_mode<synchronous>, transform_indices = @transform_3, window_bounds = array<i64: 128, 128>}, {pipeline_mode = #tpu.pipeline_mode<synchronous>, transform_indices = @transform_4, window_bounds = array<i64: 5, 128>}, {transform_indices = @transform_5, window_bounds = array<i64: 16, 128>}]} {
    %c0 = arith.constant 0 : index
    %c0_0 = arith.constant 0 : index
    %0 = vector.load %arg1[%c0, %c0_0] : memref<16x16xbf16, #tpu.memory_space<vmem>>, vector<16x16xbf16>
    %c0_1 = arith.constant 0 : index
    %c0_2 = arith.constant 0 : index
    %1 = vector.load %arg5[%c0_1, %c0_2] : memref<5x128xf32, #tpu.memory_space<vmem>>, vector<1x128xf32>
    %c1 = arith.constant 1 : index
    %c0_3 = arith.constant 0 : index
    %2 = vector.load %arg5[%c1, %c0_3] : memref<5x128xf32, #tpu.memory_space<vmem>>, vector<1x128xf32>
    %c2 = arith.constant 2 : index
    %c0_4 = arith.constant 0 : index
    %3 = vector.load %arg5[%c2, %c0_4] : memref<5x128xf32, #tpu.memory_space<vmem>>, vector<1x128xf32>
    %c3 = arith.constant 3 : index
    %c0_5 = arith.constant 0 : index
    %4 = vector.load %arg5[%c3, %c0_5] : memref<5x128xf32, #tpu.memory_space<vmem>>, vector<1x128xf32>
    %c4 = arith.constant 4 : index
    %c0_6 = arith.constant 0 : index
    %5 = vector.load %arg5[%c4, %c0_6] : memref<5x128xf32, #tpu.memory_space<vmem>>, vector<1x128xf32>
    %c0_7 = arith.constant 0 : index
    %c0_8 = arith.constant 0 : index
    %6 = vector.load %arg2[%c0_7, %c0_8] : memref<16x128xbf16, #tpu.memory_space<vmem>>, vector<16x128xbf16>
    %cst = arith.constant dense<0.000000e+00> : vector<16x128xf32>
    %7 = tpu.matmul %0, %6, %cst {dimension_numbers = #tpu.dot_dimension_numbers<[1], [0], [0], [1], [0, 0, 1, 1], [], []>} : vector<16x16xbf16>, vector<16x128xbf16>, vector<16x128xf32> -> vector<16x128xf32>
    %8 = vector.broadcast %1 : vector<1x128xf32> to vector<16x128xf32>
    %9 = arith.addf %7, %8 : vector<16x128xf32>
    %cst_9 = arith.constant 0.000000e+00 : f32
    %10 = vector.broadcast %cst_9 : f32 to vector<16x128xf32>
    %11 = arith.maximumf %9, %10 : vector<16x128xf32>
    %12 = arith.truncf %11 : vector<16x128xf32> to vector<16x128xbf16>
    %c0_10 = arith.constant 0 : index
    %c0_11 = arith.constant 0 : index
    %13 = vector.load %arg3[%c0_10, %c0_11] : memref<128x128xbf16, #tpu.memory_space<vmem>>, vector<128x128xbf16>
    %cst_12 = arith.constant dense<0.000000e+00> : vector<16x128xf32>
    %14 = tpu.matmul %12, %13, %cst_12 {dimension_numbers = #tpu.dot_dimension_numbers<[1], [0], [0], [1], [0, 0, 1, 1], [], []>} : vector<16x128xbf16>, vector<128x128xbf16>, vector<16x128xf32> -> vector<16x128xf32>
    %15 = vector.broadcast %2 : vector<1x128xf32> to vector<16x128xf32>
    %16 = arith.addf %14, %15 : vector<16x128xf32>
    %cst_13 = arith.constant 0.000000e+00 : f32
    %17 = vector.broadcast %cst_13 : f32 to vector<16x128xf32>
    %18 = arith.maximumf %16, %17 : vector<16x128xf32>
    %19 = arith.truncf %18 : vector<16x128xf32> to vector<16x128xbf16>
    %c0_14 = arith.constant 0 : index
    %c0_15 = arith.constant 0 : index
    %20 = vector.load %arg4[%c0_14, %c0_15] : memref<128x128xbf16, #tpu.memory_space<vmem>>, vector<128x128xbf16>
    %cst_16 = arith.constant dense<0.000000e+00> : vector<16x128xf32>
    %21 = tpu.matmul %19, %20, %cst_16 {dimension_numbers = #tpu.dot_dimension_numbers<[1], [0], [0], [1], [0, 0, 1, 1], [], []>} : vector<16x128xbf16>, vector<128x128xbf16>, vector<16x128xf32> -> vector<16x128xf32>
    %22 = vector.broadcast %3 : vector<1x128xf32> to vector<16x128xf32>
    %23 = arith.addf %21, %22 : vector<16x128xf32>
    %24 = vector.broadcast %4 : vector<1x128xf32> to vector<16x128xf32>
    %25 = arith.maximumf %23, %24 : vector<16x128xf32>
    %26 = vector.broadcast %5 : vector<1x128xf32> to vector<16x128xf32>
    %27 = arith.minimumf %25, %26 : vector<16x128xf32>
    %c0_17 = arith.constant 0 : index
    %c0_18 = arith.constant 0 : index
    %28 = vector.load %arg6[%c0_17, %c0_18] : memref<16x128xf32, #tpu.memory_space<vmem>>, vector<16x128xf32>
    tpu.vector_store %arg6[%c0_17, %c0_18], %27 {strides = array<i32>} : memref<16x128xf32, #tpu.memory_space<vmem>>, vector<16x128xf32>,
    return
  }
  func.func @transform_0(%arg0: i32) -> (i32, i32) {
    %c0_i32 = arith.constant 0 : i32
    %c0_i32_0 = arith.constant 0 : i32
    return %arg0, %c0_i32 : i32, i32
  }
  func.func @transform_1(%arg0: i32) -> (i32, i32) {
    %c0_i32 = arith.constant 0 : i32
    %c0_i32_0 = arith.constant 0 : i32
    %c0_i32_1 = arith.constant 0 : i32
    return %c0_i32, %c0_i32_0 : i32, i32
  }
  func.func @transform_2(%arg0: i32) -> (i32, i32) {
    %c0_i32 = arith.constant 0 : i32
    %c0_i32_0 = arith.constant 0 : i32
    %c0_i32_1 = arith.constant 0 : i32
    return %c0_i32, %c0_i32_0 : i32, i32
  }
  func.func @transform_3(%arg0: i32) -> (i32, i32) {
    %c0_i32 = arith.constant 0 : i32
    %c0_i32_0 = arith.constant 0 : i32
    %c0_i32_1 = arith.constant 0 : i32
    return %c0_i32, %c0_i32_0 : i32, i32
  }
  func.func @transform_4(%arg0: i32) -> (i32, i32) {
    %c0_i32 = arith.constant 0 : i32
    %c0_i32_0 = arith.constant 0 : i32
    %c0_i32_1 = arith.constant 0 : i32
    return %c0_i32, %c0_i32_0 : i32, i32
  }
  func.func @transform_5(%arg0: i32) -> (i32, i32) {
    %c0_i32 = arith.constant 0 : i32
    %c0_i32_0 = arith.constant 0 : i32
    return %arg0, %c0_i32 : i32, i32
  }
}

module attributes {stable_mosaic.version = 11 : i64} {
  func.func @_actor_kernel(%arg0: i32, %arg1: memref<16x16xbf16, #tpu.memory_space<vmem>>, %arg2: memref<16x128xbf16, #tpu.memory_space<vmem>>, %arg3: memref<128x128xbf16, #tpu.memory_space<vmem>>, %arg4: memref<128x128xbf16, #tpu.memory_space<vmem>>, %arg5: memref<5x128xf32, #tpu.memory_space<vmem>>, %arg6: memref<16x128xf32, #tpu.memory_space<vmem>>) attributes {dimension_semantics = [#tpu.dimension_semantics<parallel>], iteration_bounds = array<i64: 1>, scalar_prefetch = 0 : i64, scratch_operands = 0 : i64, tpu.core_type = #tpu.core_type<tc>, window_params = [{transform_indices = @transform_0, window_bounds = array<i64: 16, 16>}, {pipeline_mode = #tpu.pipeline_mode<synchronous>, transform_indices = @transform_1, window_bounds = array<i64: 16, 128>}, {pipeline_mode = #tpu.pipeline_mode<synchronous>, transform_indices = @transform_2, window_bounds = array<i64: 128, 128>}, {pipeline_mode = #tpu.pipeline_mode<synchronous>, transform_indices = @transform_3, window_bounds = array<i64: 128, 128>}, {pipeline_mode = #tpu.pipeline_mode<synchronous>, transform_indices = @transform_4, window_bounds = array<i64: 5, 128>}, {transform_indices = @transform_5, window_bounds = array<i64: 16, 128>}]} {
    %c0 = arith.constant 0 : index
    %c0_0 = arith.constant 0 : index
    %0 = vector.load %arg1[%c0, %c0_0] : memref<16x16xbf16, #tpu.memory_space<vmem>>, vector<16x16xbf16>
    %c0_1 = arith.constant 0 : index
    %c0_2 = arith.constant 0 : index
    %1 = vector.load %arg5[%c0_1, %c0_2] : memref<5x128xf32, #tpu.memory_space<vmem>>, vector<1x128xf32>
    %c1 = arith.constant 1 : index
    %c0_3 = arith.constant 0 : index
    %2 = vector.load %arg5[%c1, %c0_3] : memref<5x128xf32, #tpu.memory_space<vmem>>, vector<1x128xf32>
    %c2 = arith.constant 2 : index
    %c0_4 = arith.constant 0 : index
    %3 = vector.load %arg5[%c2, %c0_4] : memref<5x128xf32, #tpu.memory_space<vmem>>, vector<1x128xf32>
    %c3 = arith.constant 3 : index
    %c0_5 = arith.constant 0 : index
    %4 = vector.load %arg5[%c3, %c0_5] : memref<5x128xf32, #tpu.memory_space<vmem>>, vector<1x128xf32>
    %c4 = arith.constant 4 : index
    %c0_6 = arith.constant 0 : index
    %5 = vector.load %arg5[%c4, %c0_6] : memref<5x128xf32, #tpu.memory_space<vmem>>, vector<1x128xf32>
    %c0_7 = arith.constant 0 : index
    %c0_8 = arith.constant 0 : index
    %6 = vector.load %arg2[%c0_7, %c0_8] : memref<16x128xbf16, #tpu.memory_space<vmem>>, vector<16x128xbf16>
    %cst = arith.constant dense<0.000000e+00> : vector<16x128xf32>
    %7 = tpu.matmul %0, %6, %cst {dimension_numbers = #tpu.dot_dimension_numbers<[1], [0], [0], [1], [0, 0, 1, 1], [], []>} : vector<16x16xbf16>, vector<16x128xbf16>, vector<16x128xf32> -> vector<16x128xf32>
    %8 = vector.broadcast %1 : vector<1x128xf32> to vector<16x128xf32>
    %9 = arith.addf %7, %8 : vector<16x128xf32>
    %cst_9 = arith.constant 0.000000e+00 : f32
    %10 = vector.broadcast %cst_9 : f32 to vector<16x128xf32>
    %11 = arith.maximumf %9, %10 : vector<16x128xf32>
    %12 = arith.truncf %11 : vector<16x128xf32> to vector<16x128xbf16>
    %c0_10 = arith.constant 0 : index
    %c0_11 = arith.constant 0 : index
    %13 = vector.load %arg3[%c0_10, %c0_11] : memref<128x128xbf16, #tpu.memory_space<vmem>>, vector<128x128xbf16>
    %cst_12 = arith.constant dense<0.000000e+00> : vector<16x128xf32>
    %14 = tpu.matmul %12, %13, %cst_12 {dimension_numbers = #tpu.dot_dimension_numbers<[1], [0], [0], [1], [0, 0, 1, 1], [], []>} : vector<16x128xbf16>, vector<128x128xbf16>, vector<16x128xf32> -> vector<16x128xf32>
    %15 = vector.broadcast %2 : vector<1x128xf32> to vector<16x128xf32>
    %16 = arith.addf %14, %15 : vector<16x128xf32>
    %cst_13 = arith.constant 0.000000e+00 : f32
    %17 = vector.broadcast %cst_13 : f32 to vector<16x128xf32>
    %18 = arith.maximumf %16, %17 : vector<16x128xf32>
    %19 = arith.truncf %18 : vector<16x128xf32> to vector<16x128xbf16>
    %c0_14 = arith.constant 0 : index
    %c0_15 = arith.constant 0 : index
    %20 = vector.load %arg4[%c0_14, %c0_15] : memref<128x128xbf16, #tpu.memory_space<vmem>>, vector<128x128xbf16>
    %cst_16 = arith.constant dense<0.000000e+00> : vector<16x128xf32>
    %21 = tpu.matmul %19, %20, %cst_16 {dimension_numbers = #tpu.dot_dimension_numbers<[1], [0], [0], [1], [0, 0, 1, 1], [], []>} : vector<16x128xbf16>, vector<128x128xbf16>, vector<16x128xf32> -> vector<16x128xf32>
    %22 = vector.broadcast %3 : vector<1x128xf32> to vector<16x128xf32>
    %23 = arith.addf %21, %22 : vector<16x128xf32>
    %24 = vector.broadcast %4 : vector<1x128xf32> to vector<16x128xf32>
    %25 = arith.maximumf %23, %24 : vector<16x128xf32>
    %26 = vector.broadcast %5 : vector<1x128xf32> to vector<16x128xf32>
    %27 = arith.minimumf %25, %26 : vector<16x128xf32>
    %c0_17 = arith.constant 0 : index
    %c0_18 = arith.constant 0 : index
    %28 = vector.load %arg6[%c0_17, %c0_18] : memref<16x128xf32, #tpu.memory_space<vmem>>, vector<16x128xf32>
    tpu.vector_store %arg6[%c0_17, %c0_18], %27 {strides = array<i32>} : memref<16x128xf32, #tpu.memory_space<vmem>>, vector<16x128xf32>,
    return
  }
  func.func @transform_0(%arg0: i32) -> (i32, i32) {
    %c0_i32 = arith.constant 0 : i32
    %c0_i32_0 = arith.constant 0 : i32
    return %arg0, %c0_i32 : i32, i32
  }
  func.func @transform_1(%arg0: i32) -> (i32, i32) {
    %c0_i32 = arith.constant 0 : i32
    %c0_i32_0 = arith.constant 0 : i32
    %c0_i32_1 = arith.constant 0 : i32
    return %c0_i32, %c0_i32_0 : i32, i32
  }
  func.func @transform_2(%arg0: i32) -> (i32, i32) {
    %c0_i32 = arith.constant 0 : i32
    %c0_i32_0 = arith.constant 0 : i32
    %c0_i32_1 = arith.constant 0 : i32
    return %c0_i32, %c0_i32_0 : i32, i32
  }
  func.func @transform_3(%arg0: i32) -> (i32, i32) {
    %c0_i32 = arith.constant 0 : i32
    %c0_i32_0 = arith.constant 0 : i32
    %c0_i32_1 = arith.constant 0 : i32
    return %c0_i32, %c0_i32_0 : i32, i32
  }
  func.func @transform_4(%arg0: i32) -> (i32, i32) {
    %c0_i32 = arith.constant 0 : i32
    %c0_i32_0 = arith.constant 0 : i32
    %c0_i32_1 = arith.constant 0 : i32
    return %c0_i32, %c0_i32_0 : i32, i32
  }
  func.func @transform_5(%arg0: i32) -> (i32, i32) {
    %c0_i32 = arith.constant 0 : i32
    %c0_i32_0 = arith.constant 0 : i32
    return %arg0, %c0_i32 : i32, i32
  }
}

</mosaic_0001>

<llo_original>
// kernel: tpu_custom_call.1
$region0: #{tpu_custom_call.1}
  #allocation0 [shape = 'u32[]', space=smem, size = 0x4, offset = 0x4, fixed_abs, tag = 'smem constant byte address 0x4 - core index']
  #allocation1 [shape = 'u32[144,128]{1,0:T(1,128)}', space=vmem, size = 0x12000, scoped, tag = 'internal scratch']
  %s0 = inlined_call_operand.hbm [shape: bf16[16,16], index: 0, kind: input, shape index: {}]
  %s1 = inlined_call_operand.hbm [shape: bf16[16,128], index: 1, kind: input, shape index: {}]
  %s2 = inlined_call_operand.hbm [shape: bf16[128,128], index: 2, kind: input, shape index: {}]
  %s3 = inlined_call_operand.hbm [shape: bf16[128,128], index: 3, kind: input, shape index: {}]
  %s4 = inlined_call_operand.vmem [shape: f32[5,128], index: 4, kind: input, shape index: {}]
  %s5 = inlined_call_operand.hbm [shape: f32[16,128], index: 5, kind: output, shape index: {}]
  %s6 = sld [smem:[#allocation0]]
  $region46: #{tpu_custom_call.1} parent=0
    _
  %s8 = ssub.s32 1, %s6
  %s9 = scalar_select 0, %s8, %s6
  $region1: #{tpu_custom_call.1} parent=0
    #allocation2 [shape = 'u8[4096]{0}', space=vmem, size = 0x1000, scoped, tag = 'input window, operand 0, single buffered']
    #allocation3 [shape = 's32[1]{0}', space=sflag, size = 0x4, scoped, tag = 'scoped memory for tpu_custom_call.1']
    #allocation4 [shape = 's32[1]{0}', space=sflag, size = 0x4, scoped, tag = 'scoped memory for tpu_custom_call.1']
    #allocation5 [shape = 'u8[4096]{0}', space=vmem, size = 0x1000, scoped, tag = 'input window, operand 1, single buffered']
    #allocation6 [shape = 's32[1]{0}', space=sflag, size = 0x4, scoped, tag = 'scoped memory for tpu_custom_call.1']
    #allocation7 [shape = 'u8[32768]{0}', space=vmem, size = 0x8000, scoped, tag = 'input window, operand 2, single buffered']
    #allocation8 [shape = 'u8[32768]{0}', space=vmem, size = 0x8000, scoped, tag = 'input window, operand 3, single buffered']
    #allocation9 [shape = 's32[1]{0}', space=sflag, size = 0x4, scoped, tag = 'scoped memory for tpu_custom_call.1']
    #allocation10 [shape = 'u8[8192]{0}', space=vmem, size = 0x2000, scoped, tag = 'output window, operand 0, single buffered']
    %10 = vsyncpa [#allocation3], 0
    %11 = vsyncpa [#allocation6], 0
    %12 = vsyncpa [#allocation9], 0
    %13 = vsyncpa [#allocation4], 0
    // Predicated region
    $region2: #{tpu_custom_call.1} parent=1 // pred_check
      _
    $region3: #{tpu_custom_call.1} parent=1 // pred_check_branch
      %15 = sbr.rel (0) target = $region5
    $region4: #{tpu_custom_call.1} parent=1 // pred_region
      %s17 = ssub.s32 128, 128
      %18 = vsyncadd [#allocation3], %s17
      %s19 = sshll.u32 [#allocation2], 4
      %s20 = int_to_ptr.vmem [resolvable:$true] %s19
      %25 = dma.hbm_to_vmem [thread:$0]  %s0, 128, %s20, [#allocation3], 64, 64, 4
    $region5: #{tpu_custom_call.1} parent=1 // pred_fallthru
      _
    // Predicated region
    $region6: #{tpu_custom_call.1} parent=1 // pred_check
      _
    $region7: #{tpu_custom_call.1} parent=1 // pred_check_branch
      %27 = sbr.rel (0) target = $region9
    $region8: #{tpu_custom_call.1} parent=1 // pred_region
      %s29 = ssub.s32 128, 128
      %30 = vsyncadd [#allocation6], %s29
      %s31 = sshll.u32 [#allocation5], 4
      %s32 = int_to_ptr.vmem [resolvable:$true] %s31
      %37 = dma.hbm_to_vmem [thread:$0]  %s1, 128, %s32, [#allocation6], 64, 64, 4
    $region9: #{tpu_custom_call.1} parent=1 // pred_fallthru
      _
    // Predicated region
    $region10: #{tpu_custom_call.1} parent=1 // pred_check
      _
    $region11: #{tpu_custom_call.1} parent=1 // pred_check_branch
      %39 = sbr.rel (0) target = $region13
    $region12: #{tpu_custom_call.1} parent=1 // pred_region
      %s41 = ssub.s32 1024, 1024
      %42 = vsyncadd [#allocation6], %s41
      %s43 = sshll.u32 [#allocation7], 4
      %s44 = int_to_ptr.vmem [resolvable:$true] %s43
      %49 = dma.hbm_to_vmem [thread:$0]  %s2, 1024, %s44, [#allocation6], 64, 64, 4
    $region13: #{tpu_custom_call.1} parent=1 // pred_fallthru
      _
    // Predicated region
    $region14: #{tpu_custom_call.1} parent=1 // pred_check
      _
    $region15: #{tpu_custom_call.1} parent=1 // pred_check_branch
      %51 = sbr.rel (0) target = $region17
    $region16: #{tpu_custom_call.1} parent=1 // pred_region
      %s53 = ssub.s32 1024, 1024
      %54 = vsyncadd [#allocation9], %s53
      %s55 = sshll.u32 [#allocation8], 4
      %s56 = int_to_ptr.vmem [resolvable:$true] %s55
      %61 = dma.hbm_to_vmem [thread:$0]  %s3, 1024, %s56, [#allocation9], 64, 64, 4
    $region17: #{tpu_custom_call.1} parent=1 // pred_fallthru
      _
    // Predicated region
    $region18: #{tpu_custom_call.1} parent=1 // pred_check
      _
    $region19: #{tpu_custom_call.1} parent=1 // pred_check_branch
      %63 = sbr.rel (0) target = $region21
    $region20: #{tpu_custom_call.1} parent=1 // pred_region
      _
    $region21: #{tpu_custom_call.1} parent=1 // pred_fallthru
      _
    // Predicated region
    $region22: #{tpu_custom_call.1} parent=1 // pred_check
      _
    $region23: #{tpu_custom_call.1} parent=1 // pred_check_branch
      %65 = sbr.rel (0) target = $region25
    $region24: #{tpu_custom_call.1} parent=1 // pred_region
      %66 = dma.done [#allocation3], 128
    $region25: #{tpu_custom_call.1} parent=1 // pred_fallthru
      _
    // Predicated region
    $region26: #{tpu_custom_call.1} parent=1 // pred_check
      _
    $region27: #{tpu_custom_call.1} parent=1 // pred_check_branch
      %68 = sbr.rel (0) target = $region29
    $region28: #{tpu_custom_call.1} parent=1 // pred_region
      %69 = dma.done [#allocation6], 128
    $region29: #{tpu_custom_call.1} parent=1 // pred_fallthru
      _
    // Predicated region
    $region30: #{tpu_custom_call.1} parent=1 // pred_check
      _
    $region31: #{tpu_custom_call.1} parent=1 // pred_check_branch
      %71 = sbr.rel (0) target = $region33
    $region32: #{tpu_custom_call.1} parent=1 // pred_region
      %72 = dma.done [#allocation6], 1024
    $region33: #{tpu_custom_call.1} parent=1 // pred_fallthru
      _
    // Predicated region
    $region34: #{tpu_custom_call.1} parent=1 // pred_check
      _
    $region35: #{tpu_custom_call.1} parent=1 // pred_check_branch
      %74 = sbr.rel (0) target = $region37
    $region36: #{tpu_custom_call.1} parent=1 // pred_region
      %75 = dma.done [#allocation9], 1024
    $region37: #{tpu_custom_call.1} parent=1 // pred_fallthru
      _
    %v77 = vld [vmem:[#allocation2] sm:$0xf]
    %v78 = vld [vmem:[#allocation2 + $0x4] sm:$0xf]
    %v79 = vld [vmem:[%s4] sm:$0x1]
    %v80 = vld [vmem:[%s4 + $0x1] sm:$0x1]
    %v81 = vld [vmem:[%s4 + $0x2] sm:$0x1]
    %v82 = vld [vmem:[%s4 + $0x3] sm:$0x1]
    %v83 = vld [vmem:[%s4 + $0x4] sm:$0x1]
    %v84 = vld [vmem:[#allocation5] sm:$0xf]
    %v85 = vld [vmem:[#allocation5 + $0x4] sm:$0xf]
    %v86 = vlaneseq
    %v87 = vshrl.u32 %v86, 7
    %v88 = vsub.s32 0, %v87
    %v89 = vrot.slane %v79, %v88
    %v92 = vunpack.c.l.b16 %v77
    %v93 = vunpack.c.l.b16 %v78
    %v94 = vpack.c.b16 %v93, %v92
    %v97 = vunpack.c.l.b16 %v84
    %v98 = vunpack.c.l.b16 %v85
    %v99 = vpack.c.b16 %v98, %v97
    %vm101 = vcmask 130048
    %v103 = vsel %vm101, %v94, 0
    %105 = vmatprep.subr.bf16.mxu0 0
    %106 = vmatpush1.bf16.msra.mxu0 %v99
    %107 = vmatprep.subr.bf16.mxu0 0
    %108 = vmatpush1.bf16.msra.mxu0 0
    %109 = vmatprep.subr.bf16.mxu0 0
    %110 = vmatpush1.bf16.msra.mxu0 0
    %111 = vmatprep.subr.bf16.mxu0 0
    %112 = vmatpush1.bf16.msra.mxu0 0
    %113 = vmatprep.subr.bf16.mxu0 0
    %114 = vmatpush1.bf16.msra.mxu0 0
    %115 = vmatprep.subr.bf16.mxu0 0
    %116 = vmatpush1.bf16.msra.mxu0 0
    %117 = vmatprep.subr.bf16.mxu0 0
    %118 = vmatpush1.bf16.msra.mxu0 0
    %119 = vmatprep.subr.bf16.mxu0 0
    %120 = vmatpush1.bf16.msra.mxu0 0
    %121 = vmatprep.subr.bf16.mxu0 0
    %122 = vmatpush1.bf16.msra.mxu0 0
    %123 = vmatprep.subr.bf16.mxu0 0
    %124 = vmatpush1.bf16.msra.mxu0 0
    %125 = vmatprep.subr.bf16.mxu0 0
    %126 = vmatpush1.bf16.msra.mxu0 0
    %127 = vmatprep.subr.bf16.mxu0 0
    %128 = vmatpush1.bf16.msra.mxu0 0
    %129 = vmatprep.subr.bf16.mxu0 0
    %130 = vmatpush1.bf16.msra.mxu0 0
    %131 = vmatprep.subr.bf16.mxu0 0
    %132 = vmatpush1.bf16.msra.mxu0 0
    %133 = vmatprep.subr.bf16.mxu0 0
    %134 = vmatpush1.bf16.msra.mxu0 0
    %135 = vmatprep.subr.bf16.mxu0 0
    %136 = vmatpush1.bf16.msra.mxu0 0
    %137 = vmatprep.mubr.bf16.mxu0 0
    %138 = vmatmul.mubr.bf16.gmra.mrb[0].mxu0 %v103
    %v139 = vpop.f32.mrb[0].mxu0
    %v140 = vadd.f32 %v89, %v139
    %v141 = vpop.f32.mrb[0].mxu0
    %v142 = vpop.f32.mrb[0].mxu0
    %v143 = vadd.f32 %v89, %v142
    %v144 = vpop.f32.mrb[0].mxu0
    %145 = vdwg.mxu0
    %v146 = vmax.f32 %v140, 0.0
    %v147 = vmax.f32 %v143, 0.0
    %v148 = vpack.c.bf16 %v147, %v146
    %v149 = vld [vmem:[#allocation7] sm:$0xf]
    %v150 = vld [vmem:[#allocation7 + $0x4] sm:$0xf]
    %v151 = vld [vmem:[#allocation7 + $0x8] sm:$0xf]
    %v152 = vld [vmem:[#allocation7 + $0xc] sm:$0xf]
    %v153 = vld [vmem:[#allocation7 + $0x10] sm:$0xf]
    %v154 = vld [vmem:[#allocation7 + $0x14] sm:$0xf]
    %v155 = vld [vmem:[#allocation7 + $0x18] sm:$0xf]
    %v156 = vld [vmem:[#allocation7 + $0x1c] sm:$0xf]
    %v157 = vld [vmem:[#allocation7 + $0x20] sm:$0xf]
    %v158 = vld [vmem:[#allocation7 + $0x24] sm:$0xf]
    %v159 = vld [vmem:[#allocation7 + $0x28] sm:$0xf]
    %v160 = vld [vmem:[#allocation7 + $0x2c] sm:$0xf]
    %v161 = vld [vmem:[#allocation7 + $0x30] sm:$0xf]
    %v162 = vld [vmem:[#allocation7 + $0x34] sm:$0xf]
    %v163 = vld [vmem:[#allocation7 + $0x38] sm:$0xf]
    %v164 = vld [vmem:[#allocation7 + $0x3c] sm:$0xf]
    %v165 = vlaneseq
    %v166 = vshrl.u32 %v165, 7
    %v167 = vsub.s32 0, %v166
    %v168 = vrot.slane %v80, %v167
    %v185 = vunpack.c.l.b16 %v149
    %v186 = vunpack.c.l.b16 %v150
    %v187 = vunpack.c.l.b16 %v151
    %v188 = vunpack.c.l.b16 %v152
    %v189 = vunpack.c.l.b16 %v153
    %v190 = vunpack.c.l.b16 %v154
    %v191 = vunpack.c.l.b16 %v155
    %v192 = vunpack.c.l.b16 %v156
    %v193 = vunpack.c.l.b16 %v157
    %v194 = vunpack.c.l.b16 %v158
    %v195 = vunpack.c.l.b16 %v159
    %v196 = vunpack.c.l.b16 %v160
    %v197 = vunpack.c.l.b16 %v161
    %v198 = vunpack.c.l.b16 %v162
    %v199 = vunpack.c.l.b16 %v163
    %v200 = vunpack.c.l.b16 %v164
    %v201 = vpack.c.b16 %v186, %v185
    %v202 = vpack.c.b16 %v188, %v187
    %v203 = vpack.c.b16 %v190, %v189
    %v204 = vpack.c.b16 %v192, %v191
    %v205 = vpack.c.b16 %v194, %v193
    %v206 = vpack.c.b16 %v196, %v195
    %v207 = vpack.c.b16 %v198, %v197
    %v208 = vpack.c.b16 %v200, %v199
    %217 = vmatprep.subr.bf16.mxu0 0
    %218 = vmatpush1.bf16.msra.mxu0 %v201
    %219 = vmatprep.subr.bf16.mxu0 0
    %220 = vmatpush1.bf16.msra.mxu0 %v202
    %221 = vmatprep.subr.bf16.mxu0 0
    %222 = vmatpush1.bf16.msra.mxu0 %v203
    %223 = vmatprep.subr.bf16.mxu0 0
    %224 = vmatpush1.bf16.msra.mxu0 %v204
    %225 = vmatprep.subr.bf16.mxu0 0
    %226 = vmatpush1.bf16.msra.mxu0 %v205
    %227 = vmatprep.subr.bf16.mxu0 0
    %228 = vmatpush1.bf16.msra.mxu0 %v206
    %229 = vmatprep.subr.bf16.mxu0 0
    %230 = vmatpush1.bf16.msra.mxu0 %v207
    %231 = vmatprep.subr.bf16.mxu0 0
    %232 = vmatpush1.bf16.msra.mxu0 %v208
    %233 = vmatprep.subr.bf16.mxu0 0
    %234 = vmatpush1.bf16.msra.mxu0 0
    %235 = vmatprep.subr.bf16.mxu0 0
    %236 = vmatpush1.bf16.msra.mxu0 0
    %237 = vmatprep.subr.bf16.mxu0 0
    %238 = vmatpush1.bf16.msra.mxu0 0
    %239 = vmatprep.subr.bf16.mxu0 0
    %240 = vmatpush1.bf16.msra.mxu0 0
    %241 = vmatprep.subr.bf16.mxu0 0
    %242 = vmatpush1.bf16.msra.mxu0 0
    %243 = vmatprep.subr.bf16.mxu0 0
    %244 = vmatpush1.bf16.msra.mxu0 0
    %245 = vmatprep.subr.bf16.mxu0 0
    %246 = vmatpush1.bf16.msra.mxu0 0
    %247 = vmatprep.subr.bf16.mxu0 0
    %248 = vmatpush1.bf16.msra.mxu0 0
    %249 = vmatprep.mubr.bf16.mxu0 0
    %250 = vmatmul.mubr.bf16.gmra.mrb[0].mxu0 %v148
    %v251 = vpop.f32.mrb[0].mxu0
    %v252 = vadd.f32 %v168, %v251
    %v253 = vpop.f32.mrb[0].mxu0
    %v254 = vpop.f32.mrb[0].mxu0
    %v255 = vadd.f32 %v168, %v254
    %v256 = vpop.f32.mrb[0].mxu0
    %257 = vdwg.mxu0
    %v258 = vmax.f32 %v252, 0.0
    %v259 = vmax.f32 %v255, 0.0
    %v260 = vpack.c.bf16 %v259, %v258
    %v261 = vld [vmem:[#allocation8] sm:$0xf]
    %v262 = vld [vmem:[#allocation8 + $0x4] sm:$0xf]
    %v263 = vld [vmem:[#allocation8 + $0x8] sm:$0xf]
    %v264 = vld [vmem:[#allocation8 + $0xc] sm:$0xf]
    %v265 = vld [vmem:[#allocation8 + $0x10] sm:$0xf]
    %v266 = vld [vmem:[#allocation8 + $0x14] sm:$0xf]
    %v267 = vld [vmem:[#allocation8 + $0x18] sm:$0xf]
    %v268 = vld [vmem:[#allocation8 + $0x1c] sm:$0xf]
    %v269 = vld [vmem:[#allocation8 + $0x20] sm:$0xf]
    %v270 = vld [vmem:[#allocation8 + $0x24] sm:$0xf]
    %v271 = vld [vmem:[#allocation8 + $0x28] sm:$0xf]
    %v272 = vld [vmem:[#allocation8 + $0x2c] sm:$0xf]
    %v273 = vld [vmem:[#allocation8 + $0x30] sm:$0xf]
    %v274 = vld [vmem:[#allocation8 + $0x34] sm:$0xf]
    %v275 = vld [vmem:[#allocation8 + $0x38] sm:$0xf]
    %v276 = vld [vmem:[#allocation8 + $0x3c] sm:$0xf]
    %v277 = vlaneseq
    %v278 = vshrl.u32 %v277, 7
    %v279 = vsub.s32 0, %v278
    %v280 = vrot.slane %v81, %v279
    %v297 = vunpack.c.l.b16 %v261
    %v298 = vunpack.c.l.b16 %v262
    %v299 = vunpack.c.l.b16 %v263
    %v300 = vunpack.c.l.b16 %v264
    %v301 = vunpack.c.l.b16 %v265
    %v302 = vunpack.c.l.b16 %v266
    %v303 = vunpack.c.l.b16 %v267
    %v304 = vunpack.c.l.b16 %v268
    %v305 = vunpack.c.l.b16 %v269
    %v306 = vunpack.c.l.b16 %v270
    %v307 = vunpack.c.l.b16 %v271
    %v308 = vunpack.c.l.b16 %v272
    %v309 = vunpack.c.l.b16 %v273
    %v310 = vunpack.c.l.b16 %v274
    %v311 = vunpack.c.l.b16 %v275
    %v312 = vunpack.c.l.b16 %v276
    %v313 = vpack.c.b16 %v298, %v297
    %v314 = vpack.c.b16 %v300, %v299
    %v315 = vpack.c.b16 %v302, %v301
    %v316 = vpack.c.b16 %v304, %v303
    %v317 = vpack.c.b16 %v306, %v305
    %v318 = vpack.c.b16 %v308, %v307
    %v319 = vpack.c.b16 %v310, %v309
    %v320 = vpack.c.b16 %v312, %v311
    %329 = vmatprep.subr.bf16.mxu0 0
    %330 = vmatpush1.bf16.msra.mxu0 %v313
    %331 = vmatprep.subr.bf16.mxu0 0
    %332 = vmatpush1.bf16.msra.mxu0 %v314
    %333 = vmatprep.subr.bf16.mxu0 0
    %334 = vmatpush1.bf16.msra.mxu0 %v315
    %335 = vmatprep.subr.bf16.mxu0 0
    %336 = vmatpush1.bf16.msra.mxu0 %v316
    %337 = vmatprep.subr.bf16.mxu0 0
    %338 = vmatpush1.bf16.msra.mxu0 %v317
    %339 = vmatprep.subr.bf16.mxu0 0
    %340 = vmatpush1.bf16.msra.mxu0 %v318
    %341 = vmatprep.subr.bf16.mxu0 0
    %342 = vmatpush1.bf16.msra.mxu0 %v319
    %343 = vmatprep.subr.bf16.mxu0 0
    %344 = vmatpush1.bf16.msra.mxu0 %v320
    %345 = vmatprep.subr.bf16.mxu0 0
    %346 = vmatpush1.bf16.msra.mxu0 0
    %347 = vmatprep.subr.bf16.mxu0 0
    %348 = vmatpush1.bf16.msra.mxu0 0
    %349 = vmatprep.subr.bf16.mxu0 0
    %350 = vmatpush1.bf16.msra.mxu0 0
    %351 = vmatprep.subr.bf16.mxu0 0
    %352 = vmatpush1.bf16.msra.mxu0 0
    %353 = vmatprep.subr.bf16.mxu0 0
    %354 = vmatpush1.bf16.msra.mxu0 0
    %355 = vmatprep.subr.bf16.mxu0 0
    %356 = vmatpush1.bf16.msra.mxu0 0
    %357 = vmatprep.subr.bf16.mxu0 0
    %358 = vmatpush1.bf16.msra.mxu0 0
    %359 = vmatprep.subr.bf16.mxu0 0
    %360 = vmatpush1.bf16.msra.mxu0 0
    %361 = vmatprep.mubr.bf16.mxu0 0
    %362 = vmatmul.mubr.bf16.gmra.mrb[0].mxu0 %v260
    %v363 = vpop.f32.mrb[0].mxu0
    %v364 = vadd.f32 %v280, %v363
    %v365 = vpop.f32.mrb[0].mxu0
    %v366 = vpop.f32.mrb[0].mxu0
    %v367 = vadd.f32 %v280, %v366
    %v368 = vpop.f32.mrb[0].mxu0
    %369 = vdwg.mxu0
    %v370 = vlaneseq
    %v371 = vshrl.u32 %v370, 7
    %v372 = vsub.s32 0, %v371
    %v373 = vrot.slane %v82, %v372
    %v374 = vmax.f32 %v364, %v373
    %v375 = vmax.f32 %v367, %v373
    %v376 = vlaneseq
    %v377 = vshrl.u32 %v376, 7
    %v378 = vsub.s32 0, %v377
    %v379 = vrot.slane %v83, %v378
    %v380 = vmin.f32 %v374, %v379
    %v381 = vmin.f32 %v375, %v379
    %382 = vst [vmem:[#allocation10] sm:$0xff] %v380
    %383 = vst [vmem:[#allocation10 + $0x8] sm:$0xff] %v381
    // Predicated region
    $region38: #{tpu_custom_call.1} parent=1 // pred_check
      _
    $region39: #{tpu_custom_call.1} parent=1 // pred_check_branch
      %385 = sbr.rel (0) target = $region41
    $region40: #{tpu_custom_call.1} parent=1 // pred_region
      %s387 = ssub.s32 256, 256
      %388 = vsyncadd [#allocation4], %s387
      %s389 = sshll.u32 [#allocation10], 4
      %s390 = int_to_ptr.vmem [resolvable:$true] %s389
      %395 = dma.vmem_to_hbm [thread:$0]  %s390, 256, %s5, [#allocation4], 128, 128, 8
    $region41: #{tpu_custom_call.1} parent=1 // pred_fallthru
      _
    // Predicated region
    $region42: #{tpu_custom_call.1} parent=1 // pred_check
      _
    $region43: #{tpu_custom_call.1} parent=1 // pred_check_branch
      %397 = sbr.rel (0) target = $region45
    $region44: #{tpu_custom_call.1} parent=1 // pred_region
      %398 = dma.done [#allocation4], 256
    $region45: #{tpu_custom_call.1} parent=1 // pred_fallthru
      _
    %399 = vsyncpa [#allocation3], 1
    %400 = vsyncpa [#allocation6], 1
    %401 = vsyncpa [#allocation9], 1
    %402 = vsyncpa [#allocation4], 1

// kernel: tpu_custom_call.1
$region0: #{tpu_custom_call.1}
  #allocation0 [shape = 'u32[]', space=smem, size = 0x4, offset = 0x4, fixed_abs, tag = 'smem constant byte address 0x4 - core index']
  #allocation1 [shape = 'u32[144,128]{1,0:T(1,128)}', space=vmem, size = 0x12000, scoped, tag = 'internal scratch']
  %s0 = inlined_call_operand.hbm [shape: bf16[16,16], index: 0, kind: input, shape index: {}]
  %s1 = inlined_call_operand.hbm [shape: bf16[16,128], index: 1, kind: input, shape index: {}]
  %s2 = inlined_call_operand.hbm [shape: bf16[128,128], index: 2, kind: input, shape index: {}]
  %s3 = inlined_call_operand.hbm [shape: bf16[128,128], index: 3, kind: input, shape index: {}]
  %s4 = inlined_call_operand.vmem [shape: f32[5,128], index: 4, kind: input, shape index: {}]
  %s5 = inlined_call_operand.hbm [shape: f32[16,128], index: 5, kind: output, shape index: {}]
  %s6 = sld [smem:[#allocation0]]
  $region46: #{tpu_custom_call.1} parent=0
    _
  %s8 = ssub.s32 1, %s6
  %s9 = scalar_select 0, %s8, %s6
  $region1: #{tpu_custom_call.1} parent=0
    #allocation2 [shape = 'u8[4096]{0}', space=vmem, size = 0x1000, scoped, tag = 'input window, operand 0, single buffered']
    #allocation3 [shape = 's32[1]{0}', space=sflag, size = 0x4, scoped, tag = 'scoped memory for tpu_custom_call.1']
    #allocation4 [shape = 's32[1]{0}', space=sflag, size = 0x4, scoped, tag = 'scoped memory for tpu_custom_call.1']
    #allocation5 [shape = 'u8[4096]{0}', space=vmem, size = 0x1000, scoped, tag = 'input window, operand 1, single buffered']
    #allocation6 [shape = 's32[1]{0}', space=sflag, size = 0x4, scoped, tag = 'scoped memory for tpu_custom_call.1']
    #allocation7 [shape = 'u8[32768]{0}', space=vmem, size = 0x8000, scoped, tag = 'input window, operand 2, single buffered']
    #allocation8 [shape = 'u8[32768]{0}', space=vmem, size = 0x8000, scoped, tag = 'input window, operand 3, single buffered']
    #allocation9 [shape = 's32[1]{0}', space=sflag, size = 0x4, scoped, tag = 'scoped memory for tpu_custom_call.1']
    #allocation10 [shape = 'u8[8192]{0}', space=vmem, size = 0x2000, scoped, tag = 'output window, operand 0, single buffered']
    %10 = vsyncpa [#allocation3], 0
    %11 = vsyncpa [#allocation6], 0
    %12 = vsyncpa [#allocation9], 0
    %13 = vsyncpa [#allocation4], 0
    // Predicated region
    $region2: #{tpu_custom_call.1} parent=1 // pred_check
      _
    $region3: #{tpu_custom_call.1} parent=1 // pred_check_branch
      %15 = sbr.rel (0) target = $region5
    $region4: #{tpu_custom_call.1} parent=1 // pred_region
      %s17 = ssub.s32 128, 128
      %18 = vsyncadd [#allocation3], %s17
      %s19 = sshll.u32 [#allocation2], 4
      %s20 = int_to_ptr.vmem [resolvable:$true] %s19
      %25 = dma.hbm_to_vmem [thread:$0]  %s0, 128, %s20, [#allocation3], 64, 64, 4
    $region5: #{tpu_custom_call.1} parent=1 // pred_fallthru
      _
    // Predicated region
    $region6: #{tpu_custom_call.1} parent=1 // pred_check
      _
    $region7: #{tpu_custom_call.1} parent=1 // pred_check_branch
      %27 = sbr.rel (0) target = $region9
    $region8: #{tpu_custom_call.1} parent=1 // pred_region
      %s29 = ssub.s32 128, 128
      %30 = vsyncadd [#allocation6], %s29
      %s31 = sshll.u32 [#allocation5], 4
      %s32 = int_to_ptr.vmem [resolvable:$true] %s31
      %37 = dma.hbm_to_vmem [thread:$0]  %s1, 128, %s32, [#allocation6], 64, 64, 4
    $region9: #{tpu_custom_call.1} parent=1 // pred_fallthru
      _
    // Predicated region
    $region10: #{tpu_custom_call.1} parent=1 // pred_check
      _
    $region11: #{tpu_custom_call.1} parent=1 // pred_check_branch
      %39 = sbr.rel (0) target = $region13
    $region12: #{tpu_custom_call.1} parent=1 // pred_region
      %s41 = ssub.s32 1024, 1024
      %42 = vsyncadd [#allocation6], %s41
      %s43 = sshll.u32 [#allocation7], 4
      %s44 = int_to_ptr.vmem [resolvable:$true] %s43
      %49 = dma.hbm_to_vmem [thread:$0]  %s2, 1024, %s44, [#allocation6], 64, 64, 4
    $region13: #{tpu_custom_call.1} parent=1 // pred_fallthru
      _
    // Predicated region
    $region14: #{tpu_custom_call.1} parent=1 // pred_check
      _
    $region15: #{tpu_custom_call.1} parent=1 // pred_check_branch
      %51 = sbr.rel (0) target = $region17
    $region16: #{tpu_custom_call.1} parent=1 // pred_region
      %s53 = ssub.s32 1024, 1024
      %54 = vsyncadd [#allocation9], %s53
      %s55 = sshll.u32 [#allocation8], 4
      %s56 = int_to_ptr.vmem [resolvable:$true] %s55
      %61 = dma.hbm_to_vmem [thread:$0]  %s3, 1024, %s56, [#allocation9], 64, 64, 4
    $region17: #{tpu_custom_call.1} parent=1 // pred_fallthru
      _
    // Predicated region
    $region18: #{tpu_custom_call.1} parent=1 // pred_check
      _
    $region19: #{tpu_custom_call.1} parent=1 // pred_check_branch
      %63 = sbr.rel (0) target = $region21
    $region20: #{tpu_custom_call.1} parent=1 // pred_region
      _
    $region21: #{tpu_custom_call.1} parent=1 // pred_fallthru
      _
    // Predicated region
    $region22: #{tpu_custom_call.1} parent=1 // pred_check
      _
    $region23: #{tpu_custom_call.1} parent=1 // pred_check_branch
      %65 = sbr.rel (0) target = $region25
    $region24: #{tpu_custom_call.1} parent=1 // pred_region
      %66 = dma.done [#allocation3], 128
    $region25: #{tpu_custom_call.1} parent=1 // pred_fallthru
      _
    // Predicated region
    $region26: #{tpu_custom_call.1} parent=1 // pred_check
      _
    $region27: #{tpu_custom_call.1} parent=1 // pred_check_branch
      %68 = sbr.rel (0) target = $region29
    $region28: #{tpu_custom_call.1} parent=1 // pred_region
      %69 = dma.done [#allocation6], 128
    $region29: #{tpu_custom_call.1} parent=1 // pred_fallthru
      _
    // Predicated region
    $region30: #{tpu_custom_call.1} parent=1 // pred_check
      _
    $region31: #{tpu_custom_call.1} parent=1 // pred_check_branch
      %71 = sbr.rel (0) target = $region33
    $region32: #{tpu_custom_call.1} parent=1 // pred_region
      %72 = dma.done [#allocation6], 1024
    $region33: #{tpu_custom_call.1} parent=1 // pred_fallthru
      _
    // Predicated region
    $region34: #{tpu_custom_call.1} parent=1 // pred_check
      _
    $region35: #{tpu_custom_call.1} parent=1 // pred_check_branch
      %74 = sbr.rel (0) target = $region37
    $region36: #{tpu_custom_call.1} parent=1 // pred_region
      %75 = dma.done [#allocation9], 1024
    $region37: #{tpu_custom_call.1} parent=1 // pred_fallthru
      _
    %v77 = vld [vmem:[#allocation2] sm:$0xf]
    %v78 = vld [vmem:[#allocation2 + $0x4] sm:$0xf]
    %v79 = vld [vmem:[%s4] sm:$0x1]
    %v80 = vld [vmem:[%s4 + $0x1] sm:$0x1]
    %v81 = vld [vmem:[%s4 + $0x2] sm:$0x1]
    %v82 = vld [vmem:[%s4 + $0x3] sm:$0x1]
    %v83 = vld [vmem:[%s4 + $0x4] sm:$0x1]
    %v84 = vld [vmem:[#allocation5] sm:$0xf]
    %v85 = vld [vmem:[#allocation5 + $0x4] sm:$0xf]
    %v86 = vlaneseq
    %v87 = vshrl.u32 %v86, 7
    %v88 = vsub.s32 0, %v87
    %v89 = vrot.slane %v79, %v88
    %v92 = vunpack.c.l.b16 %v77
    %v93 = vunpack.c.l.b16 %v78
    %v94 = vpack.c.b16 %v93, %v92
    %v97 = vunpack.c.l.b16 %v84
    %v98 = vunpack.c.l.b16 %v85
    %v99 = vpack.c.b16 %v98, %v97
    %vm101 = vcmask 130048
    %v103 = vsel %vm101, %v94, 0
    %105 = vmatprep.subr.bf16.mxu0 0
    %106 = vmatpush1.bf16.msra.mxu0 %v99
    %107 = vmatprep.subr.bf16.mxu0 0
    %108 = vmatpush1.bf16.msra.mxu0 0
    %109 = vmatprep.subr.bf16.mxu0 0
    %110 = vmatpush1.bf16.msra.mxu0 0
    %111 = vmatprep.subr.bf16.mxu0 0
    %112 = vmatpush1.bf16.msra.mxu0 0
    %113 = vmatprep.subr.bf16.mxu0 0
    %114 = vmatpush1.bf16.msra.mxu0 0
    %115 = vmatprep.subr.bf16.mxu0 0
    %116 = vmatpush1.bf16.msra.mxu0 0
    %117 = vmatprep.subr.bf16.mxu0 0
    %118 = vmatpush1.bf16.msra.mxu0 0
    %119 = vmatprep.subr.bf16.mxu0 0
    %120 = vmatpush1.bf16.msra.mxu0 0
    %121 = vmatprep.subr.bf16.mxu0 0
    %122 = vmatpush1.bf16.msra.mxu0 0
    %123 = vmatprep.subr.bf16.mxu0 0
    %124 = vmatpush1.bf16.msra.mxu0 0
    %125 = vmatprep.subr.bf16.mxu0 0
    %126 = vmatpush1.bf16.msra.mxu0 0
    %127 = vmatprep.subr.bf16.mxu0 0
    %128 = vmatpush1.bf16.msra.mxu0 0
    %129 = vmatprep.subr.bf16.mxu0 0
    %130 = vmatpush1.bf16.msra.mxu0 0
    %131 = vmatprep.subr.bf16.mxu0 0
    %132 = vmatpush1.bf16.msra.mxu0 0
    %133 = vmatprep.subr.bf16.mxu0 0
    %134 = vmatpush1.bf16.msra.mxu0 0
    %135 = vmatprep.subr.bf16.mxu0 0
    %136 = vmatpush1.bf16.msra.mxu0 0
    %137 = vmatprep.mubr.bf16.mxu0 0
    %138 = vmatmul.mubr.bf16.gmra.mrb[0].mxu0 %v103
    %v139 = vpop.f32.mrb[0].mxu0
    %v140 = vadd.f32 %v89, %v139
    %v141 = vpop.f32.mrb[0].mxu0
    %v142 = vpop.f32.mrb[0].mxu0
    %v143 = vadd.f32 %v89, %v142
    %v144 = vpop.f32.mrb[0].mxu0
    %145 = vdwg.mxu0
    %v146 = vmax.f32 %v140, 0.0
    %v147 = vmax.f32 %v143, 0.0
    %v148 = vpack.c.bf16 %v147, %v146
    %v149 = vld [vmem:[#allocation7] sm:$0xf]
    %v150 = vld [vmem:[#allocation7 + $0x4] sm:$0xf]
    %v151 = vld [vmem:[#allocation7 + $0x8] sm:$0xf]
    %v152 = vld [vmem:[#allocation7 + $0xc] sm:$0xf]
    %v153 = vld [vmem:[#allocation7 + $0x10] sm:$0xf]
    %v154 = vld [vmem:[#allocation7 + $0x14] sm:$0xf]
    %v155 = vld [vmem:[#allocation7 + $0x18] sm:$0xf]
    %v156 = vld [vmem:[#allocation7 + $0x1c] sm:$0xf]
    %v157 = vld [vmem:[#allocation7 + $0x20] sm:$0xf]
    %v158 = vld [vmem:[#allocation7 + $0x24] sm:$0xf]
    %v159 = vld [vmem:[#allocation7 + $0x28] sm:$0xf]
    %v160 = vld [vmem:[#allocation7 + $0x2c] sm:$0xf]
    %v161 = vld [vmem:[#allocation7 + $0x30] sm:$0xf]
    %v162 = vld [vmem:[#allocation7 + $0x34] sm:$0xf]
    %v163 = vld [vmem:[#allocation7 + $0x38] sm:$0xf]
    %v164 = vld [vmem:[#allocation7 + $0x3c] sm:$0xf]
    %v165 = vlaneseq
    %v166 = vshrl.u32 %v165, 7
    %v167 = vsub.s32 0, %v166
    %v168 = vrot.slane %v80, %v167
    %v185 = vunpack.c.l.b16 %v149
    %v186 = vunpack.c.l.b16 %v150
    %v187 = vunpack.c.l.b16 %v151
    %v188 = vunpack.c.l.b16 %v152
    %v189 = vunpack.c.l.b16 %v153
    %v190 = vunpack.c.l.b16 %v154
    %v191 = vunpack.c.l.b16 %v155
    %v192 = vunpack.c.l.b16 %v156
    %v193 = vunpack.c.l.b16 %v157
    %v194 = vunpack.c.l.b16 %v158
    %v195 = vunpack.c.l.b16 %v159
    %v196 = vunpack.c.l.b16 %v160
    %v197 = vunpack.c.l.b16 %v161
    %v198 = vunpack.c.l.b16 %v162
    %v199 = vunpack.c.l.b16 %v163
    %v200 = vunpack.c.l.b16 %v164
    %v201 = vpack.c.b16 %v186, %v185
    %v202 = vpack.c.b16 %v188, %v187
    %v203 = vpack.c.b16 %v190, %v189
    %v204 = vpack.c.b16 %v192, %v191
    %v205 = vpack.c.b16 %v194, %v193
    %v206 = vpack.c.b16 %v196, %v195
    %v207 = vpack.c.b16 %v198, %v197
    %v208 = vpack.c.b16 %v200, %v199
    %217 = vmatprep.subr.bf16.mxu0 0
    %218 = vmatpush1.bf16.msra.mxu0 %v201
    %219 = vmatprep.subr.bf16.mxu0 0
    %220 = vmatpush1.bf16.msra.mxu0 %v202
    %221 = vmatprep.subr.bf16.mxu0 0
    %222 = vmatpush1.bf16.msra.mxu0 %v203
    %223 = vmatprep.subr.bf16.mxu0 0
    %224 = vmatpush1.bf16.msra.mxu0 %v204
    %225 = vmatprep.subr.bf16.mxu0 0
    %226 = vmatpush1.bf16.msra.mxu0 %v205
    %227 = vmatprep.subr.bf16.mxu0 0
    %228 = vmatpush1.bf16.msra.mxu0 %v206
    %229 = vmatprep.subr.bf16.mxu0 0
    %230 = vmatpush1.bf16.msra.mxu0 %v207
    %231 = vmatprep.subr.bf16.mxu0 0
    %232 = vmatpush1.bf16.msra.mxu0 %v208
    %233 = vmatprep.subr.bf16.mxu0 0
    %234 = vmatpush1.bf16.msra.mxu0 0
    %235 = vmatprep.subr.bf16.mxu0 0
    %236 = vmatpush1.bf16.msra.mxu0 0
    %237 = vmatprep.subr.bf16.mxu0 0
    %238 = vmatpush1.bf16.msra.mxu0 0
    %239 = vmatprep.subr.bf16.mxu0 0
    %240 = vmatpush1.bf16.msra.mxu0 0
    %241 = vmatprep.subr.bf16.mxu0 0
    %242 = vmatpush1.bf16.msra.mxu0 0
    %243 = vmatprep.subr.bf16.mxu0 0
    %244 = vmatpush1.bf16.msra.mxu0 0
    %245 = vmatprep.subr.bf16.mxu0 0
    %246 = vmatpush1.bf16.msra.mxu0 0
    %247 = vmatprep.subr.bf16.mxu0 0
    %248 = vmatpush1.bf16.msra.mxu0 0
    %249 = vmatprep.mubr.bf16.mxu0 0
    %250 = vmatmul.mubr.bf16.gmra.mrb[0].mxu0 %v148
    %v251 = vpop.f32.mrb[0].mxu0
    %v252 = vadd.f32 %v168, %v251
    %v253 = vpop.f32.mrb[0].mxu0
    %v254 = vpop.f32.mrb[0].mxu0
    %v255 = vadd.f32 %v168, %v254
    %v256 = vpop.f32.mrb[0].mxu0
    %257 = vdwg.mxu0
    %v258 = vmax.f32 %v252, 0.0
    %v259 = vmax.f32 %v255, 0.0
    %v260 = vpack.c.bf16 %v259, %v258
    %v261 = vld [vmem:[#allocation8] sm:$0xf]
    %v262 = vld [vmem:[#allocation8 + $0x4] sm:$0xf]
    %v263 = vld [vmem:[#allocation8 + $0x8] sm:$0xf]
    %v264 = vld [vmem:[#allocation8 + $0xc] sm:$0xf]
    %v265 = vld [vmem:[#allocation8 + $0x10] sm:$0xf]
    %v266 = vld [vmem:[#allocation8 + $0x14] sm:$0xf]
    %v267 = vld [vmem:[#allocation8 + $0x18] sm:$0xf]
    %v268 = vld [vmem:[#allocation8 + $0x1c] sm:$0xf]
    %v269 = vld [vmem:[#allocation8 + $0x20] sm:$0xf]
    %v270 = vld [vmem:[#allocation8 + $0x24] sm:$0xf]
    %v271 = vld [vmem:[#allocation8 + $0x28] sm:$0xf]
    %v272 = vld [vmem:[#allocation8 + $0x2c] sm:$0xf]
    %v273 = vld [vmem:[#allocation8 + $0x30] sm:$0xf]
    %v274 = vld [vmem:[#allocation8 + $0x34] sm:$0xf]
    %v275 = vld [vmem:[#allocation8 + $0x38] sm:$0xf]
    %v276 = vld [vmem:[#allocation8 + $0x3c] sm:$0xf]
    %v277 = vlaneseq
    %v278 = vshrl.u32 %v277, 7
    %v279 = vsub.s32 0, %v278
    %v280 = vrot.slane %v81, %v279
    %v297 = vunpack.c.l.b16 %v261
    %v298 = vunpack.c.l.b16 %v262
    %v299 = vunpack.c.l.b16 %v263
    %v300 = vunpack.c.l.b16 %v264
    %v301 = vunpack.c.l.b16 %v265
    %v302 = vunpack.c.l.b16 %v266
    %v303 = vunpack.c.l.b16 %v267
    %v304 = vunpack.c.l.b16 %v268
    %v305 = vunpack.c.l.b16 %v269
    %v306 = vunpack.c.l.b16 %v270
    %v307 = vunpack.c.l.b16 %v271
    %v308 = vunpack.c.l.b16 %v272
    %v309 = vunpack.c.l.b16 %v273
    %v310 = vunpack.c.l.b16 %v274
    %v311 = vunpack.c.l.b16 %v275
    %v312 = vunpack.c.l.b16 %v276
    %v313 = vpack.c.b16 %v298, %v297
    %v314 = vpack.c.b16 %v300, %v299
    %v315 = vpack.c.b16 %v302, %v301
    %v316 = vpack.c.b16 %v304, %v303
    %v317 = vpack.c.b16 %v306, %v305
    %v318 = vpack.c.b16 %v308, %v307
    %v319 = vpack.c.b16 %v310, %v309
    %v320 = vpack.c.b16 %v312, %v311
    %329 = vmatprep.subr.bf16.mxu0 0
    %330 = vmatpush1.bf16.msra.mxu0 %v313
    %331 = vmatprep.subr.bf16.mxu0 0
    %332 = vmatpush1.bf16.msra.mxu0 %v314
    %333 = vmatprep.subr.bf16.mxu0 0
    %334 = vmatpush1.bf16.msra.mxu0 %v315
    %335 = vmatprep.subr.bf16.mxu0 0
    %336 = vmatpush1.bf16.msra.mxu0 %v316
    %337 = vmatprep.subr.bf16.mxu0 0
    %338 = vmatpush1.bf16.msra.mxu0 %v317
    %339 = vmatprep.subr.bf16.mxu0 0
    %340 = vmatpush1.bf16.msra.mxu0 %v318
    %341 = vmatprep.subr.bf16.mxu0 0
    %342 = vmatpush1.bf16.msra.mxu0 %v319
    %343 = vmatprep.subr.bf16.mxu0 0
    %344 = vmatpush1.bf16.msra.mxu0 %v320
    %345 = vmatprep.subr.bf16.mxu0 0
    %346 = vmatpush1.bf16.msra.mxu0 0
    %347 = vmatprep.subr.bf16.mxu0 0
    %348 = vmatpush1.bf16.msra.mxu0 0
    %349 = vmatprep.subr.bf16.mxu0 0
    %350 = vmatpush1.bf16.msra.mxu0 0
    %351 = vmatprep.subr.bf16.mxu0 0
    %352 = vmatpush1.bf16.msra.mxu0 0
    %353 = vmatprep.subr.bf16.mxu0 0
    %354 = vmatpush1.bf16.msra.mxu0 0
    %355 = vmatprep.subr.bf16.mxu0 0
    %356 = vmatpush1.bf16.msra.mxu0 0
    %357 = vmatprep.subr.bf16.mxu0 0
    %358 = vmatpush1.bf16.msra.mxu0 0
    %359 = vmatprep.subr.bf16.mxu0 0
    %360 = vmatpush1.bf16.msra.mxu0 0
    %361 = vmatprep.mubr.bf16.mxu0 0
    %362 = vmatmul.mubr.bf16.gmra.mrb[0].mxu0 %v260
    %v363 = vpop.f32.mrb[0].mxu0
    %v364 = vadd.f32 %v280, %v363
    %v365 = vpop.f32.mrb[0].mxu0
    %v366 = vpop.f32.mrb[0].mxu0
    %v367 = vadd.f32 %v280, %v366
    %v368 = vpop.f32.mrb[0].mxu0
    %369 = vdwg.mxu0
    %v370 = vlaneseq
    %v371 = vshrl.u32 %v370, 7
    %v372 = vsub.s32 0, %v371
    %v373 = vrot.slane %v82, %v372
    %v374 = vmax.f32 %v364, %v373
    %v375 = vmax.f32 %v367, %v373
    %v376 = vlaneseq
    %v377 = vshrl.u32 %v376, 7
    %v378 = vsub.s32 0, %v377
    %v379 = vrot.slane %v83, %v378
    %v380 = vmin.f32 %v374, %v379
    %v381 = vmin.f32 %v375, %v379
    %382 = vst [vmem:[#allocation10] sm:$0xff] %v380
    %383 = vst [vmem:[#allocation10 + $0x8] sm:$0xff] %v381
    // Predicated region
    $region38: #{tpu_custom_call.1} parent=1 // pred_check
      _
    $region39: #{tpu_custom_call.1} parent=1 // pred_check_branch
      %385 = sbr.rel (0) target = $region41
    $region40: #{tpu_custom_call.1} parent=1 // pred_region
      %s387 = ssub.s32 256, 256
      %388 = vsyncadd [#allocation4], %s387
      %s389 = sshll.u32 [#allocation10], 4
      %s390 = int_to_ptr.vmem [resolvable:$true] %s389
      %395 = dma.vmem_to_hbm [thread:$0]  %s390, 256, %s5, [#allocation4], 128, 128, 8
    $region41: #{tpu_custom_call.1} parent=1 // pred_fallthru
      _
    // Predicated region
    $region42: #{tpu_custom_call.1} parent=1 // pred_check
      _
    $region43: #{tpu_custom_call.1} parent=1 // pred_check_branch
      %397 = sbr.rel (0) target = $region45
    $region44: #{tpu_custom_call.1} parent=1 // pred_region
      %398 = dma.done [#allocation4], 256
    $region45: #{tpu_custom_call.1} parent=1 // pred_fallthru
      _
    %399 = vsyncpa [#allocation3], 1
    %400 = vsyncpa [#allocation6], 1
    %401 = vsyncpa [#allocation9], 1
    %402 = vsyncpa [#allocation4], 1

</llo_original>
